<compile_context>
chip_gen: v7x
topology: tpu7x:2x2x1
jax: 0.10.0
libtpu: 0.0.40
codegen_flags: <defaults>
</compile_context>

<pallas_src>
import functools

import jax
import jax.numpy as jnp
import numpy as np
from jax import lax
from jax.experimental import pallas as pl
from jax.experimental.pallas import tpu as pltpu

EPSILON = 0.01
ALPHA = 0.8


# ---------------------------------------------------------------------------
# in-kernel helpers
# ---------------------------------------------------------------------------
def _relu(x):
    return jnp.maximum(x, 0.0)


def _fixup_cemb(cemb):
    """In-kernel equivalent of the masked_fill_ on cEmb rows [-1] / [-2], applied once
    to the VMEM-resident table (C, D)."""
    C = cemb.shape[0]
    row = lax.broadcasted_iota(jnp.int32, cemb.shape, 0)
    cemb = jnp.where((row == C - 1) & (cemb > 0.0), 1.0, cemb)
    cemb = jnp.where((row == C - 2) & (cemb < 1.0), 0.0, cemb)
    return cemb


def _onehot(idx_col, n):
    """(Bt, 1) int32 -> (Bt, n) f32 exact one-hot."""
    iota = lax.broadcasted_iota(jnp.int32, (idx_col.shape[0], n), 1)
    return (idx_col == iota).astype(jnp.float32)


def _gather_rows(cemb, idx_col):
    """Exact one-hot row selection from the resident (C, D) table -> (Bt, D)."""
    oh = _onehot(idx_col, cemb.shape[0])                       # (Bt, C)
    return jnp.sum(oh[:, :, None] * cemb[None, :, :], axis=1)  # (Bt, D)


def _gather_roles(remb_ref, idx_col):
    """Exact role-matrix selection from the resident (R, D, D) table -> (Bt, D, D).
    R (roleSize) is small, so an unrolled masked accumulation is used."""
    R, D, _ = remb_ref.shape
    sel = jnp.zeros((idx_col.shape[0], D, D), jnp.float32)
    for r in range(R):
        m = (idx_col == r).astype(jnp.float32)                 # (Bt, 1)
        sel = sel + m[:, :, None] * remb_ref[r][None, :, :]    # (Bt, D, D)
    return sel


# ---------------------------------------------------------------------------
# kernels: one grid step == one batch chunk; each step writes one partial sum.
# fac columns: [f0, f1, f2, weight]  (weight = 1 for real rows, 0 for padding).
# ---------------------------------------------------------------------------
def _kernel_concept(atype, idx_ref, fac_ref, cemb_ref, out_ref):
    """atype 0 (subsumption), 1 (Godel t_norm on the left), 2 (Godel t_cnorm right)."""
    cemb = _fixup_cemb(cemb_ref[...])
    idx = idx_ref[...]
    fac = fac_ref[...]
    e0 = _gather_rows(cemb, idx[:, 0:1]) * fac[:, 0:1]
    e1 = _gather_rows(cemb, idx[:, 1:2]) * fac[:, 1:2]
    if atype == 0:
        lefte, righte = e0, e1
    else:
        e2 = _gather_rows(cemb, idx[:, 2:3]) * fac[:, 2:3]
        if atype == 1:
            lefte, righte = jnp.minimum(e0, e1), e2
        else:  # atype == 2
            lefte, righte = e0, jnp.maximum(e1, e2)
    loss1 = -righte * _relu(lefte - righte)
    # scalar -> (1, 1) broadcast store of the chunk partial sum
    out_ref[...] = jnp.zeros_like(out_ref) + jnp.sum(loss1 * fac[:, 3:4])


def _kernel_role(atype, idx_ref, fac_ref, cemb_ref, remb_ref, out_ref):
    """atype 3 (exist), 4 (forall), 5/6 (role compositions). VPU broadcast+reduce
    batched mat-vecs (D=32)."""
    ia = 1.0 - ALPHA
    cemb = _fixup_cemb(cemb_ref[...])
    idx = idx_ref[...]
    fac = fac_ref[...]
    w = fac[:, 3:4]
    if atype == 3:
        lefte = _gather_rows(cemb, idx[:, 0:1]) * fac[:, 0:1]       # neg(cEmb[left])
        lefte2 = _gather_rows(cemb, idx[:, 1:2]) * fac[:, 1:2]      # neg(cEmb[right[:,1]])
        Rg = _gather_roles(remb_ref, idx[:, 2:3])                   # rEmb[right[:,0]]
        righte = jnp.max(jnp.minimum(Rg, lefte2[:, None, :]), axis=2)      # exist
        righte2 = jnp.sum(lefte[:, :, None] * Rg, axis=1)                  # bmm(lefte, R)
        righte1 = jnp.sum(Rg * lefte2[:, None, :], axis=2)                 # bmm(R, lefte2)
        loss1 = (lefte2 * (_relu(ia - righte2) * _relu(lefte2 - ia))
                 + (righte - 1.0) * (_relu(ia - righte1) * _relu(righte - ia)))
    elif atype == 4:
        lefte2 = _gather_rows(cemb, idx[:, 0:1]) * fac[:, 0:1]      # neg(cEmb[right[:,1]])
        Rg = _gather_roles(remb_ref, idx[:, 1:2])                   # rEmb[right[:,0]]
        righte = jnp.min(jnp.maximum(1.0 - Rg, lefte2[:, None, :]), axis=2)  # forall
        righte1 = jnp.sum(Rg * lefte2[:, None, :], axis=2)
        loss1 = righte * (_relu(ia - righte1) * _relu(righte - ia))
    else:  # atype 5 / 6
        righte = _gather_rows(cemb, idx[:, 0:1]) * fac[:, 0:1]      # neg(cEmb[right])
        lefte2 = _gather_rows(cemb, idx[:, 1:2]) * fac[:, 1:2]      # neg(cEmb[left[:,1]])
        Rg = _gather_roles(remb_ref, idx[:, 2:3])                   # rEmb[left[:,0]]
        righte1 = jnp.sum(Rg * lefte2[:, None, :], axis=2)          # bmm(R, lefte2)
        if atype == 5:
            loss1 = (1.0 - righte) * (_relu(righte1 - ALPHA) * _relu(ALPHA - righte))
        else:  # atype == 6
            righte2 = jnp.sum(righte[:, :, None] * Rg, axis=1)      # bmm(righte, R)
            loss1 = ((1.0 - lefte2) * (_relu(righte2 - ALPHA) * _relu(ALPHA - lefte2))
                     - righte * (_relu(righte1 - ALPHA) * _relu(ALPHA - righte)))
    out_ref[...] = jnp.zeros_like(out_ref) + jnp.sum(loss1 * w)


# ---------------------------------------------------------------------------
# wrapper
# ---------------------------------------------------------------------------
def _round_up(x, m):
    return ((x + m - 1) // m) * m


def dfalc2_forward(cEmb, rEmb, left, right, negf, atype, *, max_batch_tile=256):
    """Returns torch.mean(torch.sum(loss1, 1)) of DFALC2.forward (Godel logic)."""
    C, D = cEmb.shape
    R = rEmb.shape[0]
    B = negf.shape[0]
    nf = negf.astype(jnp.float32)
    s = 1.0 - 2.0 * nf                      # the (negf * -2 + 1) factor of neg()
    ones = jnp.ones((B,), jnp.float32)
    zidx = jnp.zeros((B,), jnp.int32)
    i32 = lambda a: a.astype(jnp.int32)

    if atype == 0:
        idx_cols = [i32(left), i32(right), zidx, zidx]
        fac_cols = [1.0 + 2.0 * nf[:, 0], s[:, 1], ones]   # neg(., -negf0), neg(., negf1)
        use_role = False
    elif atype == 1:
        idx_cols = [i32(left[:, 0]), i32(left[:, 1]), i32(right), zidx]
        fac_cols = [s[:, 0], s[:, 1], s[:, 2]]
        use_role = False
    elif atype == 2:
        idx_cols = [i32(left), i32(right[:, 0]), i32(right[:, 1]), zidx]
        fac_cols = [s[:, 0], s[:, 1], s[:, 2]]
        use_role = False
    elif atype == 3:
        idx_cols = [i32(left), i32(right[:, 1]), i32(right[:, 0]), zidx]
        fac_cols = [s[:, 0], s[:, 1], ones]
        use_role = True
    elif atype == 4:
        idx_cols = [i32(right[:, 1]), i32(right[:, 0]), zidx, zidx]
        fac_cols = [s[:, 1], ones, ones]
        use_role = True
    elif atype in (5, 6):
        idx_cols = [i32(right), i32(left[:, 1]), i32(left[:, 0]), zidx]
        fac_cols = [s[:, 1], s[:, 0], ones]
        use_role = True
    else:
        raise ValueError(f"unsupported atype {atype}")

    idx = jnp.stack(idx_cols, axis=1)                   # (B, 4) int32
    fac = jnp.stack(fac_cols + [ones], axis=1)          # (B, 4) f32, col 3 = validity weight

    # batch tiling: sublane-dense chunks; pad with zero-index / zero-weight rows
    B_tile = min(max_batch_tile, _round_up(B, 8))
    B_pad = _round_up(B, B_tile)
    if B_pad != B:
        idx = jnp.pad(idx, ((0, B_pad - B), (0, 0)))
        fac = jnp.pad(fac, ((0, B_pad - B), (0, 0)))
    num_chunks = B_pad // B_tile

    in_specs = [
        pl.BlockSpec((B_tile, 4), lambda c: (c, 0)),     # idx
        pl.BlockSpec((B_tile, 4), lambda c: (c, 0)),     # fac / weight
        pl.BlockSpec((C, D), lambda c: (0, 0)),          # cEmb, VMEM-resident
    ]
    ins = [idx, fac, cEmb]
    if use_role:
        in_specs.append(pl.BlockSpec((R, D, D), lambda c: (0, 0, 0)))   # rEmb, resident
        ins.append(rEmb)
        kernel = functools.partial(_kernel_role, atype)
    else:
        kernel = functools.partial(_kernel_concept, atype)

    partials = pl.pallas_call(
        kernel,
        out_shape=jax.ShapeDtypeStruct((num_chunks, 1, 1), jnp.float32),
        grid=(num_chunks,),
        in_specs=in_specs,
        out_specs=pl.BlockSpec((None, 1, 1), lambda c: (c, 0, 0)),
        compiler_params=pltpu.CompilerParams(
            dimension_semantics=("parallel",)),          # per-chunk partials: megacore OK
    )(*ins)
    return jnp.sum(partials) / B                         # single 1/B scale, done once


# ---------------------------------------------------------------------------
# pure-JAX reference (mirrors the PyTorch forward, Godel logic)
# ---------------------------------------------------------------------------
def dfalc2_forward_ref(cEmb, rEmb, left, right, negf, atype):
    cEmb = cEmb.at[-1, :].set(jnp.where(cEmb[-1, :] > 0.0, 1.0, cEmb[-1, :]))
    cEmb = cEmb.at[-2, :].set(jnp.where(cEmb[-2, :] < 1.0, 0.0, cEmb[-2, :]))
    nf = negf.astype(jnp.float32)
    relu = lambda x: jnp.maximum(x, 0.0)
    neg = lambda x, f: (f[:, None] * -2.0 + 1.0) * x
    ia = 1.0 - ALPHA
    if atype == 0:
        lefte = neg(cEmb[left], -nf[:, 0]); righte = neg(cEmb[right], nf[:, 1])
        loss1 = -righte * relu(lefte - righte)
    elif atype == 1:
        righte = neg(cEmb[right], nf[:, 2])
        lefte = jnp.minimum(neg(cEmb[left[:, 0]], nf[:, 0]), neg(cEmb[left[:, 1]], nf[:, 1]))
        loss1 = -righte * relu(lefte - righte)
    elif atype == 2:
        lefte = neg(cEmb[left], nf[:, 0])
        righte = jnp.maximum(neg(cEmb[right[:, 0]], nf[:, 1]), neg(cEmb[right[:, 1]], nf[:, 2]))
        loss1 = -righte * relu(lefte - righte)
    elif atype == 3:
        lefte = neg(cEmb[left], nf[:, 0])
        R = rEmb[right[:, 0]]
        lefte2 = neg(cEmb[right[:, 1]], nf[:, 1])
        righte = jnp.max(jnp.minimum(R, lefte2[:, None, :]), axis=2)
        righte2 = jnp.einsum('bi,bij->bj', lefte, R)
        righte1 = jnp.einsum('bij,bj->bi', R, lefte2)
        loss1 = (lefte2 * (relu(ia - righte2) * relu(lefte2 - ia))
                 + (righte - 1.0) * (relu(ia - righte1) * relu(righte - ia)))
    elif atype == 4:
        R = rEmb[right[:, 0]]
        lefte2 = neg(cEmb[right[:, 1]], nf[:, 1])
        righte = jnp.min(jnp.maximum(1.0 - R, lefte2[:, None, :]), axis=2)
        righte1 = jnp.einsum('bij,bj->bi', R, lefte2)
        loss1 = righte * (relu(ia - righte1) * relu(righte - ia))
    elif atype == 5:
        R = rEmb[left[:, 0]]
        righte = neg(cEmb[right], nf[:, 1])
        lefte2 = neg(cEmb[left[:, 1]], nf[:, 0])
        righte1 = jnp.einsum('bij,bj->bi', R, lefte2)
        loss1 = (1.0 - righte) * (relu(righte1 - ALPHA) * relu(ALPHA - righte))
    else:
        R = rEmb[left[:, 0]]
        righte = neg(cEmb[right], nf[:, 1])
        lefte2 = neg(cEmb[left[:, 1]], nf[:, 0])
        righte2 = jnp.einsum('bi,bij->bj', righte, R)
        righte1 = jnp.einsum('bij,bj->bi', R, lefte2)
        loss1 = ((1.0 - lefte2) * (relu(righte2 - ALPHA) * relu(ALPHA - lefte2))
                 - righte * (relu(righte1 - ALPHA) * relu(ALPHA - righte)))
    return jnp.mean(jnp.sum(loss1, axis=1))


# ---------------------------------------------------------------------------
if __name__ == "__main__":
    key = jax.random.PRNGKey(0)
    conceptSize, roleSize, D, B = 16, 4, 32, 8
    k1, k2, k3, k4, k5, k6, k7 = jax.random.split(key, 7)

    # deterministic synthetic parameters (shapes from __init__: cEmb_init, rEmb_init)
    cEmb = jax.random.uniform(k1, (conceptSize, D), jnp.float32)
    rEmb = jax.random.uniform(k2, (roleSize, D, D), jnp.float32)

    negf = jax.random.randint(k3, (B, 3), 0, 2).astype(jnp.float32)
    c_a = jax.random.randint(k4, (B,), 0, conceptSize)            # concept indices
    c_b = jax.random.randint(k5, (B,), 0, conceptSize)
    c_pair = jax.random.randint(k6, (B, 2), 0, conceptSize)       # concept index pairs
    role = jax.random.randint(k7, (B,), 0, roleSize)              # role indices
    rc_pair = jnp.stack([role, c_b], axis=1)                      # (role, concept) pairs

    batches = {
        0: (c_a, c_b),
        1: (c_pair, c_b),
        2: (c_a, c_pair),
        3: (c_a, rc_pair),
        4: (c_a, rc_pair),
        5: (rc_pair, c_b),
        6: (rc_pair, c_b),
    }

    for atype, (left, right) in batches.items():
        got = jax.block_until_ready(dfalc2_forward(cEmb, rEmb, left, right, negf, atype))
        want = jax.block_until_ready(dfalc2_forward_ref(cEmb, rEmb, left, right, negf, atype))
        np.testing.assert_allclose(np.asarray(got), np.asarray(want), rtol=1e-5, atol=1e-5)

    print("KERNEL_OK")
</pallas_src>

<mosaic_0001>
module attributes {stable_mosaic.version = 11 : i64} {
  func.func @_kernel_concept(%arg0: i32, %arg1: memref<8x4xi32, #tpu.memory_space<vmem>>, %arg2: memref<8x4xf32, #tpu.memory_space<vmem>>, %arg3: memref<16x32xf32, #tpu.memory_space<vmem>>, %arg4: memref<1x1x1xf32, #tpu.memory_space<vmem>>) attributes {dimension_semantics = [#tpu.dimension_semantics<parallel>], iteration_bounds = array<i64: 1>, scalar_prefetch = 0 : i64, scratch_operands = 0 : i64, tpu.core_type = #tpu.core_type<tc>, window_params = [{transform_indices = @transform_0, window_bounds = array<i64: 8, 4>}, {transform_indices = @transform_1, window_bounds = array<i64: 8, 4>}, {pipeline_mode = #tpu.pipeline_mode<synchronous>, transform_indices = @transform_2, window_bounds = array<i64: 16, 32>}, {transform_indices = @transform_3, window_bounds = array<i64: 1, 1, 1>}]} {
    %c0 = arith.constant 0 : index
    %c0_0 = arith.constant 0 : index
    %0 = vector.load %arg3[%c0, %c0_0] : memref<16x32xf32, #tpu.memory_space<vmem>>, vector<16x32xf32>
    %1 = tpu.iota {dimensions = array<i32: 0>} : vector<16x32xi32>
    %c15_i32 = arith.constant 15 : i32
    %2 = vector.broadcast %c15_i32 : i32 to vector<16x32xi32>
    %3 = arith.cmpi eq, %1, %2 : vector<16x32xi32>
    %cst = arith.constant 0.000000e+00 : f32
    %4 = vector.broadcast %cst : f32 to vector<16x32xf32>
    %5 = arith.cmpf ogt, %0, %4 : vector<16x32xf32>
    %6 = arith.andi %3, %5 : vector<16x32xi1>
    %cst_1 = arith.constant 1.000000e+00 : f32
    %7 = vector.broadcast %cst_1 : f32 to vector<16x32xf32>
    %8 = arith.select %6, %7, %0 : vector<16x32xi1>, vector<16x32xf32>
    %c14_i32 = arith.constant 14 : i32
    %9 = vector.broadcast %c14_i32 : i32 to vector<16x32xi32>
    %10 = arith.cmpi eq, %1, %9 : vector<16x32xi32>
    %cst_2 = arith.constant 1.000000e+00 : f32
    %11 = vector.broadcast %cst_2 : f32 to vector<16x32xf32>
    %12 = arith.cmpf olt, %8, %11 : vector<16x32xf32>
    %13 = arith.andi %10, %12 : vector<16x32xi1>
    %cst_3 = arith.constant 0.000000e+00 : f32
    %14 = vector.broadcast %cst_3 : f32 to vector<16x32xf32>
    %15 = arith.select %13, %14, %8 : vector<16x32xi1>, vector<16x32xf32>
    %c0_4 = arith.constant 0 : index
    %c0_5 = arith.constant 0 : index
    %16 = vector.load %arg1[%c0_4, %c0_5] : memref<8x4xi32, #tpu.memory_space<vmem>>, vector<8x4xi32>
    %c0_6 = arith.constant 0 : index
    %c0_7 = arith.constant 0 : index
    %17 = vector.load %arg2[%c0_6, %c0_7] : memref<8x4xf32, #tpu.memory_space<vmem>>, vector<8x4xf32>
    %18 = vector.extract_strided_slice %16 {offsets = [0, 0], sizes = [8, 1], strides = [1, 1]} : vector<8x4xi32> to vector<8x1xi32>
    %19 = tpu.iota {dimensions = array<i32: 1>} : vector<8x16xi32>
    %20 = vector.broadcast %18 : vector<8x1xi32> to vector<8x16xi32>
    %21 = arith.cmpi eq, %20, %19 : vector<8x16xi32>
    %22 = arith.extui %21 : vector<8x16xi1> to vector<8x16xi32>
    %23 = arith.sitofp %22 : vector<8x16xi32> to vector<8x16xf32>
    %24 = vector.shape_cast %23 : vector<8x16xf32> to vector<8x16x1xf32>
    %25 = vector.shape_cast %15 : vector<16x32xf32> to vector<1x16x32xf32>
    %26 = vector.broadcast %24 : vector<8x16x1xf32> to vector<8x16x32xf32>
    %27 = vector.broadcast %25 : vector<1x16x32xf32> to vector<8x16x32xf32>
    %28 = arith.mulf %26, %27 : vector<8x16x32xf32>
    %cst_8 = arith.constant dense<0.000000e+00> : vector<8x32xf32>
    %29 = vector.multi_reduction <add>, %28, %cst_8 [1] : vector<8x16x32xf32> to vector<8x32xf32>
    %30 = vector.extract_strided_slice %17 {offsets = [0, 0], sizes = [8, 1], strides = [1, 1]} : vector<8x4xf32> to vector<8x1xf32>
    %31 = vector.broadcast %30 : vector<8x1xf32> to vector<8x32xf32>
    %32 = arith.mulf %29, %31 : vector<8x32xf32>
    %33 = vector.extract_strided_slice %16 {offsets = [0, 1], sizes = [8, 1], strides = [1, 1]} : vector<8x4xi32> to vector<8x1xi32>
    %34 = tpu.iota {dimensions = array<i32: 1>} : vector<8x16xi32>
    %35 = vector.broadcast %33 : vector<8x1xi32> to vector<8x16xi32>
    %36 = arith.cmpi eq, %35, %34 : vector<8x16xi32>
    %37 = arith.extui %36 : vector<8x16xi1> to vector<8x16xi32>
    %38 = arith.sitofp %37 : vector<8x16xi32> to vector<8x16xf32>
    %39 = vector.shape_cast %38 : vector<8x16xf32> to vector<8x16x1xf32>
    %40 = vector.shape_cast %15 : vector<16x32xf32> to vector<1x16x32xf32>
    %41 = vector.broadcast %39 : vector<8x16x1xf32> to vector<8x16x32xf32>
    %42 = vector.broadcast %40 : vector<1x16x32xf32> to vector<8x16x32xf32>
    %43 = arith.mulf %41, %42 : vector<8x16x32xf32>
    %cst_9 = arith.constant dense<0.000000e+00> : vector<8x32xf32>
    %44 = vector.multi_reduction <add>, %43, %cst_9 [1] : vector<8x16x32xf32> to vector<8x32xf32>
    %45 = vector.extract_strided_slice %17 {offsets = [0, 1], sizes = [8, 1], strides = [1, 1]} : vector<8x4xf32> to vector<8x1xf32>
    %46 = vector.broadcast %45 : vector<8x1xf32> to vector<8x32xf32>
    %47 = arith.mulf %44, %46 : vector<8x32xf32>
    %cst_10 = arith.constant 0.000000e+00 : f32
    %48 = vector.broadcast %cst_10 : f32 to vector<8x32xf32>
    %49 = arith.subf %48, %47 : vector<8x32xf32>
    %50 = arith.subf %32, %47 : vector<8x32xf32>
    %cst_11 = arith.constant 0.000000e+00 : f32
    %51 = vector.broadcast %cst_11 : f32 to vector<8x32xf32>
    %52 = arith.maximumf %50, %51 : vector<8x32xf32>
    %53 = arith.mulf %49, %52 : vector<8x32xf32>
    %cst_12 = arith.constant 0.000000e+00 : f32
    %54 = vector.broadcast %cst_12 : f32 to vector<1x1xf32>
    %55 = vector.extract_strided_slice %17 {offsets = [0, 3], sizes = [8, 1], strides = [1, 1]} : vector<8x4xf32> to vector<8x1xf32>
    %56 = vector.broadcast %55 : vector<8x1xf32> to vector<8x32xf32>
    %57 = arith.mulf %53, %56 : vector<8x32xf32>
    %58 = vector.shape_cast %57 : vector<8x32xf32> to vector<1x8x32xf32>
    %cst_13 = arith.constant dense<0.000000e+00> : vector<1xf32>
    %59 = vector.multi_reduction <add>, %58, %cst_13 [1, 2] : vector<1x8x32xf32> to vector<1xf32>
    %60 = vector.shape_cast %59 : vector<1xf32> to vector<1x1x1xf32>
    %61 = vector.extract %60[0, 0, 0] : f32 from vector<1x1x1xf32>
    %62 = vector.broadcast %61 : f32 to vector<1x1xf32>
    %63 = arith.addf %54, %62 : vector<1x1xf32>
    %c0_14 = arith.constant 0 : index
    %c0_15 = arith.constant 0 : index
    %c0_16 = arith.constant 0 : index
    %64 = vector.load %arg4[%c0_14, %c0_15, %c0_16] : memref<1x1x1xf32, #tpu.memory_space<vmem>>, vector<1x1x1xf32>
    %65 = vector.shape_cast %64 : vector<1x1x1xf32> to vector<1x1xf32>
    %66 = vector.shape_cast %63 : vector<1x1xf32> to vector<1x1x1xf32>
    tpu.vector_store %arg4[%c0_14, %c0_15, %c0_16], %66 {strides = array<i32>} : memref<1x1x1xf32, #tpu.memory_space<vmem>>, vector<1x1x1xf32>,
    return
  }
  func.func @transform_0(%arg0: i32) -> (i32, i32) {
    %c0_i32 = arith.constant 0 : i32
    %c0_i32_0 = arith.constant 0 : i32
    return %arg0, %c0_i32 : i32, i32
  }
  func.func @transform_1(%arg0: i32) -> (i32, i32) {
    %c0_i32 = arith.constant 0 : i32
    %c0_i32_0 = arith.constant 0 : i32
    return %arg0, %c0_i32 : i32, i32
  }
  func.func @transform_2(%arg0: i32) -> (i32, i32) {
    %c0_i32 = arith.constant 0 : i32
    %c0_i32_0 = arith.constant 0 : i32
    %c0_i32_1 = arith.constant 0 : i32
    return %c0_i32, %c0_i32_0 : i32, i32
  }
  func.func @transform_3(%arg0: i32) -> (i32, i32, i32) {
    %c0_i32 = arith.constant 0 : i32
    %c0_i32_0 = arith.constant 0 : i32
    %c0_i32_1 = arith.constant 0 : i32
    return %arg0, %c0_i32, %c0_i32_0 : i32, i32, i32
  }
}

</mosaic_0001>

<llo_original>
// kernel: tpu_custom_call.1
$region0: #{tpu_custom_call.1}
  #allocation0 [shape = 'u32[]', space=smem, size = 0x4, offset = 0x4, fixed_abs, tag = 'smem constant byte address 0x4 - core index']
  #allocation1 [shape = 'u32[144,128]{1,0:T(1,128)}', space=vmem, size = 0x12000, scoped, tag = 'internal scratch']
  %s0 = inlined_call_operand.vmem [shape: s32[8,4], index: 0, kind: input, shape index: {}]
  %s1 = inlined_call_operand.vmem [shape: f32[8,4], index: 1, kind: input, shape index: {}]
  %s2 = inlined_call_operand.vmem [shape: f32[16,32], index: 2, kind: input, shape index: {}]
  %s3 = inlined_call_operand.hbm [shape: f32[1,1,1], index: 3, kind: output, shape index: {}]
  %s4 = sld [smem:[#allocation0]]
  $region22: #{tpu_custom_call.1} parent=0
    _
  %s6 = ssub.s32 1, %s4
  %s7 = scalar_select 0, %s6, %s4
  $region1: #{tpu_custom_call.1} parent=0
    #allocation2 [shape = 'u8[512]{0}', space=vmem, size = 0x400, scoped, tag = 'output window, operand 0, single buffered']
    #allocation3 [shape = 's32[1]{0}', space=sflag, size = 0x4, scoped, tag = 'scoped memory for tpu_custom_call.1']
    %8 = vsyncpa [#allocation3], 0
    // Predicated region
    $region2: #{tpu_custom_call.1} parent=1 // pred_check
      _
    $region3: #{tpu_custom_call.1} parent=1 // pred_check_branch
      %10 = sbr.rel (0) target = $region5
    $region4: #{tpu_custom_call.1} parent=1 // pred_region
      _
    $region5: #{tpu_custom_call.1} parent=1 // pred_fallthru
      _
    // Predicated region
    $region6: #{tpu_custom_call.1} parent=1 // pred_check
      _
    $region7: #{tpu_custom_call.1} parent=1 // pred_check_branch
      %12 = sbr.rel (0) target = $region9
    $region8: #{tpu_custom_call.1} parent=1 // pred_region
      _
    $region9: #{tpu_custom_call.1} parent=1 // pred_fallthru
      _
    // Predicated region
    $region10: #{tpu_custom_call.1} parent=1 // pred_check
      _
    $region11: #{tpu_custom_call.1} parent=1 // pred_check_branch
      %14 = sbr.rel (0) target = $region13
    $region12: #{tpu_custom_call.1} parent=1 // pred_region
      _
    $region13: #{tpu_custom_call.1} parent=1 // pred_fallthru
      _
    %v15 = vld [vmem:[%s2] sm:$0xff]
    %v16 = vld [vmem:[%s2 + $0x8] sm:$0xff]
    %v17 = vlaneseq
    %v18 = vshrl.u32 %v17, 7
    %v19 = vadd.s32 %v18, 8
    %vm20 = vcmp.eq.s32.totalorder %v18, 15
    %vm21 = vcmp.eq.s32.totalorder %v19, 15
    %vm22 = vcmp.gt.f32.partialorder %v15, 0.0
    %vm23 = vcmp.gt.f32.partialorder %v16, 0.0
    %vm24 = vmand %vm20, %vm22
    %vm25 = vmand %vm21, %vm23
    %v26 = vsel %vm24, 1.0, %v15
    %v27 = vsel %vm25, 1.0, %v16
    %vm28 = vcmp.eq.s32.totalorder %v18, 14
    %vm29 = vcmp.eq.s32.totalorder %v19, 14
    %vm30 = vcmp.lt.f32.partialorder %v26, 1.0
    %vm31 = vcmp.lt.f32.partialorder %v27, 1.0
    %vm32 = vmand %vm28, %vm30
    %vm33 = vmand %vm29, %vm31
    %v34 = vsel %vm32, 0.0, %v26
    %v35 = vsel %vm33, 0.0, %v27
    %v36 = vld [vmem:[%s0] sm:$0xff]
    %v37 = vld [vmem:[%s1] sm:$0xff]
    %v38 = vlaneseq
    %v39 = vand.u32 %v38, 127
    %40 = vset.pattern.permute.xlu0 0
    %41 = vperm.xlu0 %40, %v36
    %v42 = vpop.permute.xlu0 %41
    %vm43 = vcmp.eq.s32.totalorder %v42, %v39
    %v44 = vsel %vm43, 1, 0
    %v45 = vcvt.s32.f32 %v44
    %v46 = vlaneseq
    %v47 = vshrl.u32 %v46, 7
    %v48 = vsub.s32 0, %v47
    %v49 = vrot.slane %v45, %v48
    %51 = vbcast.lane.b32.xlu0 %v49, 256
    %v52 = vpop.permute.xlu0 %51
    %s54 = sor.u32 256, 8
    %55 = vbcast.lane.b32.xlu0 %v49, %s54
    %v56 = vpop.permute.xlu0 %55
    %v57 = vlaneseq
    %v58 = vshrl.u32 %v57, 7
    %v59 = vsub.s32 1, %v58
    %v60 = vrot.slane %v45, %v59
    %62 = vbcast.lane.b32.xlu0 %v60, 256
    %v63 = vpop.permute.xlu0 %62
    %s65 = sor.u32 256, 8
    %66 = vbcast.lane.b32.xlu0 %v60, %s65
    %v67 = vpop.permute.xlu0 %66
    %v68 = vlaneseq
    %v69 = vshrl.u32 %v68, 7
    %v70 = vsub.s32 2, %v69
    %v71 = vrot.slane %v45, %v70
    %73 = vbcast.lane.b32.xlu0 %v71, 256
    %v74 = vpop.permute.xlu0 %73
    %s76 = sor.u32 256, 8
    %77 = vbcast.lane.b32.xlu0 %v71, %s76
    %v78 = vpop.permute.xlu0 %77
    %v79 = vlaneseq
    %v80 = vshrl.u32 %v79, 7
    %v81 = vsub.s32 3, %v80
    %v82 = vrot.slane %v45, %v81
    %84 = vbcast.lane.b32.xlu0 %v82, 256
    %v85 = vpop.permute.xlu0 %84
    %s87 = sor.u32 256, 8
    %88 = vbcast.lane.b32.xlu0 %v82, %s87
    %v89 = vpop.permute.xlu0 %88
    %v90 = vlaneseq
    %v91 = vshrl.u32 %v90, 7
    %v92 = vsub.s32 4, %v91
    %v93 = vrot.slane %v45, %v92
    %95 = vbcast.lane.b32.xlu0 %v93, 256
    %v96 = vpop.permute.xlu0 %95
    %s98 = sor.u32 256, 8
    %99 = vbcast.lane.b32.xlu0 %v93, %s98
    %v100 = vpop.permute.xlu0 %99
    %v101 = vlaneseq
    %v102 = vshrl.u32 %v101, 7
    %v103 = vsub.s32 5, %v102
    %v104 = vrot.slane %v45, %v103
    %106 = vbcast.lane.b32.xlu0 %v104, 256
    %v107 = vpop.permute.xlu0 %106
    %s109 = sor.u32 256, 8
    %110 = vbcast.lane.b32.xlu0 %v104, %s109
    %v111 = vpop.permute.xlu0 %110
    %v112 = vlaneseq
    %v113 = vshrl.u32 %v112, 7
    %v114 = vsub.s32 6, %v113
    %v115 = vrot.slane %v45, %v114
    %117 = vbcast.lane.b32.xlu0 %v115, 256
    %v118 = vpop.permute.xlu0 %117
    %s120 = sor.u32 256, 8
    %121 = vbcast.lane.b32.xlu0 %v115, %s120
    %v122 = vpop.permute.xlu0 %121
    %v123 = vlaneseq
    %v124 = vshrl.u32 %v123, 7
    %v125 = vsub.s32 7, %v124
    %v126 = vrot.slane %v45, %v125
    %128 = vbcast.lane.b32.xlu0 %v126, 256
    %v129 = vpop.permute.xlu0 %128
    %s131 = sor.u32 256, 8
    %132 = vbcast.lane.b32.xlu0 %v126, %s131
    %v133 = vpop.permute.xlu0 %132
    %v134 = vmul.f32 %v52, %v34
    %v135 = vmul.f32 %v56, %v35
    %v136 = vmul.f32 %v63, %v34
    %v137 = vmul.f32 %v67, %v35
    %v138 = vmul.f32 %v74, %v34
    %v139 = vmul.f32 %v78, %v35
    %v140 = vmul.f32 %v85, %v34
    %v141 = vmul.f32 %v89, %v35
    %v142 = vmul.f32 %v96, %v34
    %v143 = vmul.f32 %v100, %v35
    %v144 = vmul.f32 %v107, %v34
    %v145 = vmul.f32 %v111, %v35
    %v146 = vmul.f32 %v118, %v34
    %v147 = vmul.f32 %v122, %v35
    %v148 = vmul.f32 %v129, %v34
    %v149 = vmul.f32 %v133, %v35
    %vm150 = vcmask 261120
    %v151 = vsel %vm150, %v134, 0.0
    %v152 = vsel %vm150, %v135, 0.0
    %v153 = vadd.f32 %v151, %v152
    %v154 = vrot.slane %v153, 4
    %v155 = vadd.f32 %v153, %v154
    %v156 = vrot.slane %v155, 2
    %v157 = vadd.f32 %v155, %v156
    %v158 = vrot.slane %v157, 1
    %v159 = vadd.f32 %v157, %v158
    %v160 = vsel %vm150, %v136, 0.0
    %v161 = vsel %vm150, %v137, 0.0
    %v162 = vadd.f32 %v160, %v161
    %v163 = vrot.slane %v162, 4
    %v164 = vadd.f32 %v162, %v163
    %v165 = vrot.slane %v164, 2
    %v166 = vadd.f32 %v164, %v165
    %v167 = vrot.slane %v166, 1
    %v168 = vadd.f32 %v166, %v167
    %v169 = vsel %vm150, %v138, 0.0
    %v170 = vsel %vm150, %v139, 0.0
    %v171 = vadd.f32 %v169, %v170
    %v172 = vrot.slane %v171, 4
    %v173 = vadd.f32 %v171, %v172
    %v174 = vrot.slane %v173, 2
    %v175 = vadd.f32 %v173, %v174
    %v176 = vrot.slane %v175, 1
    %v177 = vadd.f32 %v175, %v176
    %v178 = vsel %vm150, %v140, 0.0
    %v179 = vsel %vm150, %v141, 0.0
    %v180 = vadd.f32 %v178, %v179
    %v181 = vrot.slane %v180, 4
    %v182 = vadd.f32 %v180, %v181
    %v183 = vrot.slane %v182, 2
    %v184 = vadd.f32 %v182, %v183
    %v185 = vrot.slane %v184, 1
    %v186 = vadd.f32 %v184, %v185
    %v187 = vsel %vm150, %v142, 0.0
    %v188 = vsel %vm150, %v143, 0.0
    %v189 = vadd.f32 %v187, %v188
    %v190 = vrot.slane %v189, 4
    %v191 = vadd.f32 %v189, %v190
    %v192 = vrot.slane %v191, 2
    %v193 = vadd.f32 %v191, %v192
    %v194 = vrot.slane %v193, 1
    %v195 = vadd.f32 %v193, %v194
    %v196 = vsel %vm150, %v144, 0.0
    %v197 = vsel %vm150, %v145, 0.0
    %v198 = vadd.f32 %v196, %v197
    %v199 = vrot.slane %v198, 4
    %v200 = vadd.f32 %v198, %v199
    %v201 = vrot.slane %v200, 2
    %v202 = vadd.f32 %v200, %v201
    %v203 = vrot.slane %v202, 1
    %v204 = vadd.f32 %v202, %v203
    %v205 = vsel %vm150, %v146, 0.0
    %v206 = vsel %vm150, %v147, 0.0
    %v207 = vadd.f32 %v205, %v206
    %v208 = vrot.slane %v207, 4
    %v209 = vadd.f32 %v207, %v208
    %v210 = vrot.slane %v209, 2
    %v211 = vadd.f32 %v209, %v210
    %v212 = vrot.slane %v211, 1
    %v213 = vadd.f32 %v211, %v212
    %v214 = vsel %vm150, %v148, 0.0
    %v215 = vsel %vm150, %v149, 0.0
    %v216 = vadd.f32 %v214, %v215
    %v217 = vrot.slane %v216, 4
    %v218 = vadd.f32 %v216, %v217
    %v219 = vrot.slane %v218, 2
    %v220 = vadd.f32 %v218, %v219
    %v221 = vrot.slane %v220, 1
    %v222 = vadd.f32 %v220, %v221
    %224 = vset.pattern.permute.xlu0 0
    %225 = vperm.xlu0 %224, %v37
    %v226 = vpop.permute.xlu0 %225
    %v227 = vrot.slane %v226, 1
    %v228 = vrot.slane %v226, 2
    %v229 = vrot.slane %v226, 3
    %v230 = vrot.slane %v226, 4
    %v231 = vrot.slane %v226, 5
    %v232 = vrot.slane %v226, 6
    %v233 = vrot.slane %v226, 7
    %v242 = vmul.f32 %v159, %v226
    %v243 = vmul.f32 %v168, %v227
    %v244 = vmul.f32 %v177, %v228
    %v245 = vmul.f32 %v186, %v229
    %v246 = vmul.f32 %v195, %v230
    %v247 = vmul.f32 %v204, %v231
    %v248 = vmul.f32 %v213, %v232
    %v249 = vmul.f32 %v222, %v233
    %250 = vset.pattern.permute.xlu0 1
    %251 = vperm.xlu0 %250, %v36
    %v252 = vpop.permute.xlu0 %251
    %vm253 = vcmp.eq.s32.totalorder %v252, %v39
    %v254 = vsel %vm253, 1, 0
    %v255 = vcvt.s32.f32 %v254
    %v256 = vlaneseq
    %v257 = vshrl.u32 %v256, 7
    %v258 = vsub.s32 0, %v257
    %v259 = vrot.slane %v255, %v258
    %261 = vbcast.lane.b32.xlu0 %v259, 256
    %v262 = vpop.permute.xlu0 %261
    %s264 = sor.u32 256, 8
    %265 = vbcast.lane.b32.xlu0 %v259, %s264
    %v266 = vpop.permute.xlu0 %265
    %v267 = vlaneseq
    %v268 = vshrl.u32 %v267, 7
    %v269 = vsub.s32 1, %v268
    %v270 = vrot.slane %v255, %v269
    %272 = vbcast.lane.b32.xlu0 %v270, 256
    %v273 = vpop.permute.xlu0 %272
    %s275 = sor.u32 256, 8
    %276 = vbcast.lane.b32.xlu0 %v270, %s275
    %v277 = vpop.permute.xlu0 %276
    %v278 = vlaneseq
    %v279 = vshrl.u32 %v278, 7
    %v280 = vsub.s32 2, %v279
    %v281 = vrot.slane %v255, %v280
    %283 = vbcast.lane.b32.xlu0 %v281, 256
    %v284 = vpop.permute.xlu0 %283
    %s286 = sor.u32 256, 8
    %287 = vbcast.lane.b32.xlu0 %v281, %s286
    %v288 = vpop.permute.xlu0 %287
    %v289 = vlaneseq
    %v290 = vshrl.u32 %v289, 7
    %v291 = vsub.s32 3, %v290
    %v292 = vrot.slane %v255, %v291
    %294 = vbcast.lane.b32.xlu0 %v292, 256
    %v295 = vpop.permute.xlu0 %294
    %s297 = sor.u32 256, 8
    %298 = vbcast.lane.b32.xlu0 %v292, %s297
    %v299 = vpop.permute.xlu0 %298
    %v300 = vlaneseq
    %v301 = vshrl.u32 %v300, 7
    %v302 = vsub.s32 4, %v301
    %v303 = vrot.slane %v255, %v302
    %305 = vbcast.lane.b32.xlu0 %v303, 256
    %v306 = vpop.permute.xlu0 %305
    %s308 = sor.u32 256, 8
    %309 = vbcast.lane.b32.xlu0 %v303, %s308
    %v310 = vpop.permute.xlu0 %309
    %v311 = vlaneseq
    %v312 = vshrl.u32 %v311, 7
    %v313 = vsub.s32 5, %v312
    %v314 = vrot.slane %v255, %v313
    %316 = vbcast.lane.b32.xlu0 %v314, 256
    %v317 = vpop.permute.xlu0 %316
    %s319 = sor.u32 256, 8
    %320 = vbcast.lane.b32.xlu0 %v314, %s319
    %v321 = vpop.permute.xlu0 %320
    %v322 = vlaneseq
    %v323 = vshrl.u32 %v322, 7
    %v324 = vsub.s32 6, %v323
    %v325 = vrot.slane %v255, %v324
    %327 = vbcast.lane.b32.xlu0 %v325, 256
    %v328 = vpop.permute.xlu0 %327
    %s330 = sor.u32 256, 8
    %331 = vbcast.lane.b32.xlu0 %v325, %s330
    %v332 = vpop.permute.xlu0 %331
    %v333 = vlaneseq
    %v334 = vshrl.u32 %v333, 7
    %v335 = vsub.s32 7, %v334
    %v336 = vrot.slane %v255, %v335
    %338 = vbcast.lane.b32.xlu0 %v336, 256
    %v339 = vpop.permute.xlu0 %338
    %s341 = sor.u32 256, 8
    %342 = vbcast.lane.b32.xlu0 %v336, %s341
    %v343 = vpop.permute.xlu0 %342
    %v344 = vmul.f32 %v262, %v34
    %v345 = vmul.f32 %v266, %v35
    %v346 = vmul.f32 %v273, %v34
    %v347 = vmul.f32 %v277, %v35
    %v348 = vmul.f32 %v284, %v34
    %v349 = vmul.f32 %v288, %v35
    %v350 = vmul.f32 %v295, %v34
    %v351 = vmul.f32 %v299, %v35
    %v352 = vmul.f32 %v306, %v34
    %v353 = vmul.f32 %v310, %v35
    %v354 = vmul.f32 %v317, %v34
    %v355 = vmul.f32 %v321, %v35
    %v356 = vmul.f32 %v328, %v34
    %v357 = vmul.f32 %v332, %v35
    %v358 = vmul.f32 %v339, %v34
    %v359 = vmul.f32 %v343, %v35
    %v360 = vsel %vm150, %v344, 0.0
    %v361 = vsel %vm150, %v345, 0.0
    %v362 = vadd.f32 %v360, %v361
    %v363 = vrot.slane %v362, 4
    %v364 = vadd.f32 %v362, %v363
    %v365 = vrot.slane %v364, 2
    %v366 = vadd.f32 %v364, %v365
    %v367 = vrot.slane %v366, 1
    %v368 = vadd.f32 %v366, %v367
    %v369 = vsel %vm150, %v346, 0.0
    %v370 = vsel %vm150, %v347, 0.0
    %v371 = vadd.f32 %v369, %v370
    %v372 = vrot.slane %v371, 4
    %v373 = vadd.f32 %v371, %v372
    %v374 = vrot.slane %v373, 2
    %v375 = vadd.f32 %v373, %v374
    %v376 = vrot.slane %v375, 1
    %v377 = vadd.f32 %v375, %v376
    %v378 = vsel %vm150, %v348, 0.0
    %v379 = vsel %vm150, %v349, 0.0
    %v380 = vadd.f32 %v378, %v379
    %v381 = vrot.slane %v380, 4
    %v382 = vadd.f32 %v380, %v381
    %v383 = vrot.slane %v382, 2
    %v384 = vadd.f32 %v382, %v383
    %v385 = vrot.slane %v384, 1
    %v386 = vadd.f32 %v384, %v385
    %v387 = vsel %vm150, %v350, 0.0
    %v388 = vsel %vm150, %v351, 0.0
    %v389 = vadd.f32 %v387, %v388
    %v390 = vrot.slane %v389, 4
    %v391 = vadd.f32 %v389, %v390
    %v392 = vrot.slane %v391, 2
    %v393 = vadd.f32 %v391, %v392
    %v394 = vrot.slane %v393, 1
    %v395 = vadd.f32 %v393, %v394
    %v396 = vsel %vm150, %v352, 0.0
    %v397 = vsel %vm150, %v353, 0.0
    %v398 = vadd.f32 %v396, %v397
    %v399 = vrot.slane %v398, 4
    %v400 = vadd.f32 %v398, %v399
    %v401 = vrot.slane %v400, 2
    %v402 = vadd.f32 %v400, %v401
    %v403 = vrot.slane %v402, 1
    %v404 = vadd.f32 %v402, %v403
    %v405 = vsel %vm150, %v354, 0.0
    %v406 = vsel %vm150, %v355, 0.0
    %v407 = vadd.f32 %v405, %v406
    %v408 = vrot.slane %v407, 4
    %v409 = vadd.f32 %v407, %v408
    %v410 = vrot.slane %v409, 2
    %v411 = vadd.f32 %v409, %v410
    %v412 = vrot.slane %v411, 1
    %v413 = vadd.f32 %v411, %v412
    %v414 = vsel %vm150, %v356, 0.0
    %v415 = vsel %vm150, %v357, 0.0
    %v416 = vadd.f32 %v414, %v415
    %v417 = vrot.slane %v416, 4
    %v418 = vadd.f32 %v416, %v417
    %v419 = vrot.slane %v418, 2
    %v420 = vadd.f32 %v418, %v419
    %v421 = vrot.slane %v420, 1
    %v422 = vadd.f32 %v420, %v421
    %v423 = vsel %vm150, %v358, 0.0
    %v424 = vsel %vm150, %v359, 0.0
    %v425 = vadd.f32 %v423, %v424
    %v426 = vrot.slane %v425, 4
    %v427 = vadd.f32 %v425, %v426
    %v428 = vrot.slane %v427, 2
    %v429 = vadd.f32 %v427, %v428
    %v430 = vrot.slane %v429, 1
    %v431 = vadd.f32 %v429, %v430
    %432 = vset.pattern.permute.xlu0 1
    %433 = vperm.xlu0 %432, %v37
    %v434 = vpop.permute.xlu0 %433
    %v435 = vrot.slane %v434, 1
    %v436 = vrot.slane %v434, 2
    %v437 = vrot.slane %v434, 3
    %v438 = vrot.slane %v434, 4
    %v439 = vrot.slane %v434, 5
    %v440 = vrot.slane %v434, 6
    %v441 = vrot.slane %v434, 7
    %v450 = vmul.f32 %v368, %v434
    %v451 = vmul.f32 %v377, %v435
    %v452 = vmul.f32 %v386, %v436
    %v453 = vmul.f32 %v395, %v437
    %v454 = vmul.f32 %v404, %v438
    %v455 = vmul.f32 %v413, %v439
    %v456 = vmul.f32 %v422, %v440
    %v457 = vmul.f32 %v431, %v441
    %v458 = vsub.f32 0.0, %v450
    %v459 = vsub.f32 0.0, %v451
    %v460 = vsub.f32 0.0, %v452
    %v461 = vsub.f32 0.0, %v453
    %v462 = vsub.f32 0.0, %v454
    %v463 = vsub.f32 0.0, %v455
    %v464 = vsub.f32 0.0, %v456
    %v465 = vsub.f32 0.0, %v457
    %v466 = vsub.f32 %v242, %v450
    %v467 = vsub.f32 %v243, %v451
    %v468 = vsub.f32 %v244, %v452
    %v469 = vsub.f32 %v245, %v453
    %v470 = vsub.f32 %v246, %v454
    %v471 = vsub.f32 %v247, %v455
    %v472 = vsub.f32 %v248, %v456
    %v473 = vsub.f32 %v249, %v457
    %v474 = vmax.f32 %v466, 0.0
    %v475 = vmax.f32 %v467, 0.0
    %v476 = vmax.f32 %v468, 0.0
    %v477 = vmax.f32 %v469, 0.0
    %v478 = vmax.f32 %v470, 0.0
    %v479 = vmax.f32 %v471, 0.0
    %v480 = vmax.f32 %v472, 0.0
    %v481 = vmax.f32 %v473, 0.0
    %v482 = vmul.f32 %v458, %v474
    %v483 = vmul.f32 %v459, %v475
    %v484 = vmul.f32 %v460, %v476
    %v485 = vmul.f32 %v461, %v477
    %v486 = vmul.f32 %v462, %v478
    %v487 = vmul.f32 %v463, %v479
    %v488 = vmul.f32 %v464, %v480
    %v489 = vmul.f32 %v465, %v481
    %490 = vset.pattern.permute.xlu0 3
    %491 = vperm.xlu0 %490, %v37
    %v492 = vpop.permute.xlu0 %491
    %v493 = vrot.slane %v492, 1
    %v494 = vrot.slane %v492, 2
    %v495 = vrot.slane %v492, 3
    %v496 = vrot.slane %v492, 4
    %v497 = vrot.slane %v492, 5
    %v498 = vrot.slane %v492, 6
    %v499 = vrot.slane %v492, 7
    %v508 = vmul.f32 %v482, %v492
    %v509 = vmul.f32 %v483, %v493
    %v510 = vmul.f32 %v484, %v494
    %v511 = vmul.f32 %v485, %v495
    %v512 = vmul.f32 %v486, %v496
    %v513 = vmul.f32 %v487, %v497
    %v514 = vmul.f32 %v488, %v498
    %v515 = vmul.f32 %v489, %v499
    %v524 = vrot.slane %v509, 7
    %vm525 = vcmask 1041409
    %v526 = vsel %vm525, %v524, %v508
    %v527 = vrot.slane %v510, 6
    %vm528 = vcmask 1042434
    %v529 = vsel %vm528, %v527, %v526
    %v530 = vrot.slane %v511, 5
    %vm531 = vcmask 1043459
    %v532 = vsel %vm531, %v530, %v529
    %v533 = vrot.slane %v512, 4
    %vm534 = vcmask 1044484
    %v535 = vsel %vm534, %v533, %v532
    %v536 = vrot.slane %v513, 3
    %vm537 = vcmask 1045509
    %v538 = vsel %vm537, %v536, %v535
    %v539 = vrot.slane %v514, 2
    %vm540 = vcmask 1046534
    %v541 = vsel %vm540, %v539, %v538
    %v542 = vrot.slane %v515, 1
    %vm543 = vcmask 1047559
    %v544 = vsel %vm543, %v542, %v541
    %v546 = vsel %vm150, %v544, 0.0
    %547 = vadd.xlane.f32.xlu0 %v546
    %v548 = vpop.xlane.xlu0 %547
    %v549 = vrot.slane %v548, 4
    %v550 = vadd.f32 %v548, %v549
    %v551 = vrot.slane %v550, 2
    %v552 = vadd.f32 %v550, %v551
    %v553 = vrot.slane %v552, 1
    %v554 = vadd.f32 %v552, %v553
    %s555 = vtos %v554
    %v556 = vstv %s555
    %v557 = vadd.f32 %v556, 0.0
    %vm558 = vcmask 0
    %559 = vst.msk [vmem:[#allocation2] sm:$0x1] %vm558, %v557
    // Predicated region
    $region14: #{tpu_custom_call.1} parent=1 // pred_check
      _
    $region15: #{tpu_custom_call.1} parent=1 // pred_check_branch
      %561 = sbr.rel (0) target = $region17
    $region16: #{tpu_custom_call.1} parent=1 // pred_region
      %s563 = ssub.s32 16, 16
      %564 = vsyncadd [#allocation3], %s563
      %s566 = sshll.u32 [#allocation2], 4
      %s567 = int_to_ptr.vmem [resolvable:$true] %s566
      %569 = dma.vmem_to_hbm [thread:$0]  %s567, 16, %s3, [#allocation3]
    $region17: #{tpu_custom_call.1} parent=1 // pred_fallthru
      _
    // Predicated region
    $region18: #{tpu_custom_call.1} parent=1 // pred_check
      _
    $region19: #{tpu_custom_call.1} parent=1 // pred_check_branch
      %571 = sbr.rel (0) target = $region21
    $region20: #{tpu_custom_call.1} parent=1 // pred_region
      %572 = dma.done [#allocation3], 16
    $region21: #{tpu_custom_call.1} parent=1 // pred_fallthru
      _
    %573 = vsyncpa [#allocation3], 1

</llo_original>
